<compile_context>
chip_gen: v6e
topology: v6e:2x2x1
jax: 0.10.0
libtpu: 0.0.40
codegen_flags: <defaults>
</compile_context>

<pallas_src>
import math

import jax
import jax.numpy as jnp
from jax.experimental import pallas as pl
from jax.experimental.pallas import tpu as pltpu


def _round_up(v, m):
    return ((v + m - 1) // m) * m


def _pad_to(a, target_shape):
    pads = [(0, t - s) for s, t in zip(a.shape, target_shape)]
    if all(p == (0, 0) for p in pads):
        return a
    return jnp.pad(a, pads)


def _vmem_capacity_bytes():
    try:
        return int(pltpu.get_tpu_info().vmem_capacity_bytes)
    except Exception:
        return 64 * 1024 * 1024  # conservative fallback: v7x per-TensorCore VMEM


def _largest_divisor_tile(total, target, quantum):
    """Largest multiple of `quantum` that divides `total` and is <= target."""
    target = max(quantum, min(total, target))
    best = quantum
    t = quantum
    while t <= target:
        if total % t == 0:
            best = t
        t += quantum
    return best


def _choose_tiles(B, N_p, Fi_p, Fo_p, in_isz, out_isz, sup_isz, budget):
    # Resident weight + bias: the default pipeline still double-buffers them,
    # so charge 2x here (instead of single-buffering via pl.Buffered(1)).
    fixed = 2 * (Fi_p * Fo_p * in_isz + Fo_p * 4)

    # Row-tile target ~512 rows (measured 85%+ HBM-roofline regime), multiple
    # of 8 (sublane), and dividing N_p so the grid has no ragged row tile.
    tn = _largest_divisor_tile(N_p, target=512, quantum=8)
    while True:
        per_batch = (
            2 * N_p * Fi_p * in_isz          # x tile (double-buffered)
            + 2 * tn * N_p * in_isz          # graph row slab (double-buffered)
            + 2 * tn * Fo_p * out_isz        # output tile (double-buffered)
            + N_p * Fo_p * sup_isz           # resident support scratch
            + (N_p * Fo_p + tn * Fo_p) * 4   # f32 matmul / einsum intermediates
        )
        bt = (budget - fixed) // per_batch
        if bt >= 1 or tn <= 8:
            break
        tn = _largest_divisor_tile(N_p, target=tn // 2, quantum=8)

    bt = max(1, int(bt))
    if B >= 2:
        # >= 2 "parallel" batch steps so both v7x TensorCores get work
        # (no measurable cost on single-TC v5e/v6e).
        bt = min(bt, -(-B // 2))
    bt = min(bt, B)
    while B % bt:  # bt must divide B: padded batches would cost full DMA+MXU work
        bt -= 1
    return int(bt), int(tn)


def _gcn_kernel(x_ref, g_ref, w_ref, b_ref, o_ref, sup_ref):
    # x_ref:   (bt, N_p, Fi_p)   g_ref: (bt, tn, N_p)   w_ref: (Fi_p, Fo_p)
    # b_ref:   (1, Fo_p)         o_ref: (bt, tn, Fo_p)  sup_ref: (bt, N_p, Fo_p)
    @pl.when(pl.program_id(1) == 0)
    def _():
        bt, n, fi = x_ref.shape
        fo = w_ref.shape[1]
        # Batch-fused x @ W on the MXU (one tall matmul instead of bt tiny
        # ones); f32 accumulation, stored once per batch tile.
        sup = jnp.dot(
            x_ref[...].reshape(bt * n, fi),
            w_ref[...],
            preferred_element_type=jnp.float32,
        ).reshape(bt, n, fo)
        sup_ref[...] = sup.astype(sup_ref.dtype)

    # Row slab of graph @ support; f32 accumulation, bias add, single downcast.
    out = jnp.einsum(
        "brm,bmo->bro",
        g_ref[...],
        sup_ref[...],
        preferred_element_type=jnp.float32,
    )
    o_ref[...] = (out + b_ref[...]).astype(o_ref.dtype)


def graph_convolution(x, graph, weight, bias, *, compute_dtype=None):
    """out[b] = graph[b] @ (x[b] @ weight) + bias, all inside one Pallas kernel."""
    B, N, F_in = x.shape
    F_out = weight.shape[1]
    assert graph.shape == (B, N, N)
    assert weight.shape == (F_in, F_out)
    assert bias.shape == (F_out,)

    out_dtype = x.dtype
    in_dtype = jnp.dtype(compute_dtype) if compute_dtype is not None else jnp.dtype(x.dtype)

    # ---- layout padding --------------------------------------------------
    sublane = 16 if in_dtype.itemsize == 2 else 8
    if N >= 64:
        N_p = _round_up(N, 128)   # lane-dense graph rows, full MXU K dimension
    else:
        N_p = _round_up(N, sublane)  # tiny graphs: don't inflate the N^2 operand
    Fi_p = _round_up(F_in, 128)
    Fo_p = _round_up(F_out, 128)

    # ---- generation-aware VMEM budget -------------------------------------
    vmem_cap = _vmem_capacity_bytes()
    # ~48 MiB on v7x (64 MiB/TC), ~96 MiB on v5e/v6e (128 MiB), capped at 100 MiB.
    vmem_limit = min(vmem_cap * 3 // 4, 100 * 1024 * 1024)
    budget = vmem_limit * 3 // 4          # ~25% headroom for regalloc/spill slack

    in_isz = in_dtype.itemsize
    out_isz = jnp.dtype(out_dtype).itemsize
    sup_isz = in_isz                      # support scratch held in compute dtype

    bt, tn = _choose_tiles(B, N_p, Fi_p, Fo_p, in_isz, out_isz, sup_isz, budget)
    num_b = B // bt                       # bt divides B by construction
    num_r = N_p // tn                     # tn divides N_p by construction

    # ---- pad + (optionally) cast inputs in the wrapper ---------------------
    x_p = _pad_to(x, (B, N_p, Fi_p))
    g_p = _pad_to(graph, (B, N_p, N_p))
    w_p = _pad_to(weight, (Fi_p, Fo_p))
    b_p = _pad_to(bias, (Fo_p,)).reshape(1, Fo_p)
    if compute_dtype is not None:
        # Cast *before* pallas_call: halves the HBM bytes of the dominant graph
        # DMA on bandwidth-bound v5e/v6e (in-kernel astype would save no bytes).
        x_p = x_p.astype(compute_dtype)
        g_p = g_p.astype(compute_dtype)
        w_p = w_p.astype(compute_dtype)

    out_p = pl.pallas_call(
        _gcn_kernel,
        out_shape=jax.ShapeDtypeStruct((B, N_p, Fo_p), out_dtype),
        grid_spec=pltpu.PrefetchScalarGridSpec(
            num_scalar_prefetch=0,
            grid=(num_b, num_r),
            in_specs=[
                pl.BlockSpec((bt, N_p, Fi_p), lambda b, r: (b, 0, 0)),  # x (per batch tile)
                pl.BlockSpec((bt, tn, N_p), lambda b, r: (b, r, 0)),    # graph row slab
                pl.BlockSpec((Fi_p, Fo_p), lambda b, r: (0, 0)),        # resident W
                pl.BlockSpec((1, Fo_p), lambda b, r: (0, 0)),           # resident bias
            ],
            out_specs=pl.BlockSpec((bt, tn, Fo_p), lambda b, r: (b, r, 0)),
            scratch_shapes=[pltpu.VMEM((bt, N_p, Fo_p), in_dtype)],     # support
        ),
        compiler_params=pltpu.CompilerParams(
            dimension_semantics=("parallel", "arbitrary"),
            vmem_limit_bytes=int(vmem_limit),
        ),
    )(x_p, g_p, w_p, b_p)

    # Strip padding (zero-padded rows/cols contribute nothing; exact).
    return out_p[:, :N, :F_out]


def reference(x, graph, weight, bias):
    # Pure-JAX reference of the PyTorch forward.
    support = jnp.einsum("bnf,fo->bno", x, weight)
    out = jnp.einsum("bnm,bmo->bno", graph, support)
    return out + bias


if __name__ == "__main__":
    # Small deterministic problem: B=2 graphs, N=16 nodes, in=32, out=32 features.
    B, N, F_in, F_out = 2, 16, 32, 32

    key = jax.random.PRNGKey(0)
    k_x, k_g, k_w, k_b = jax.random.split(key, 4)

    x = jax.random.normal(k_x, (B, N, F_in), dtype=jnp.float32)
    # Dense "sparse" graph operator (row-normalized adjacency-like matrix).
    graph = jax.random.uniform(k_g, (B, N, N), dtype=jnp.float32)
    graph = graph / jnp.sum(graph, axis=-1, keepdims=True)

    # Deterministic parameter init matching reset_parameters():
    # uniform(-stdv, stdv) with stdv = 6 / sqrt(in_features + out_features)
    stdv = 6.0 / math.sqrt(F_in + F_out)
    weight = jax.random.uniform(
        k_w, (F_in, F_out), dtype=jnp.float32, minval=-stdv, maxval=stdv
    )
    bias = jax.random.uniform(
        k_b, (F_out,), dtype=jnp.float32, minval=-stdv, maxval=stdv
    )

    # f32 path for the exact check (compute_dtype=jnp.bfloat16 is the
    # bandwidth-bound v5e/v6e option; it will not meet the 1e-5 tolerance).
    out = graph_convolution(x, graph, weight, bias)
    out = jax.block_until_ready(out)

    ref = reference(x, graph, weight, bias)
    assert out.shape == (B, N, F_out)
    assert jnp.allclose(out, ref, atol=1e-5, rtol=1e-5), "mismatch vs reference"

    print("KERNEL_OK")
</pallas_src>

<mosaic_0001>
module attributes {stable_mosaic.version = 11 : i64} {
  func.func @_gcn_kernel(%arg0: i32, %arg1: i32, %arg2: memref<1x16x128xf32, #tpu.memory_space<vmem>>, %arg3: memref<1x16x16xf32, #tpu.memory_space<vmem>>, %arg4: memref<128x128xf32, #tpu.memory_space<vmem>>, %arg5: memref<1x128xf32, #tpu.memory_space<vmem>>, %arg6: memref<1x16x128xf32, #tpu.memory_space<vmem>>, %arg7: memref<1x16x128xf32, #tpu.memory_space<vmem>>) attributes {dimension_semantics = [#tpu.dimension_semantics<parallel>, #tpu.dimension_semantics<arbitrary>], iteration_bounds = array<i64: 2, 1>, scalar_prefetch = 0 : i64, scratch_operands = 1 : i64, tpu.core_type = #tpu.core_type<tc>, window_params = [{transform_indices = @transform_0, window_bounds = array<i64: 1, 16, 128>}, {transform_indices = @transform_1, window_bounds = array<i64: 1, 16, 16>}, {pipeline_mode = #tpu.pipeline_mode<synchronous>, transform_indices = @transform_2, window_bounds = array<i64: 128, 128>}, {pipeline_mode = #tpu.pipeline_mode<synchronous>, transform_indices = @transform_3, window_bounds = array<i64: 1, 128>}, {transform_indices = @transform_4, window_bounds = array<i64: 1, 16, 128>}]} {
    %c0_i32 = arith.constant 0 : i32
    %0 = arith.cmpi eq, %arg1, %c0_i32 : i32
    %1 = arith.extui %0 : i1 to i32
    %c0_i32_0 = arith.constant 0 : i32
    %2 = arith.cmpi ne, %1, %c0_i32_0 : i32
    scf.if %2 {
      %c0_11 = arith.constant 0 : index
      %c0_12 = arith.constant 0 : index
      %c0_13 = arith.constant 0 : index
      %11 = vector.load %arg2[%c0_11, %c0_12, %c0_13] : memref<1x16x128xf32, #tpu.memory_space<vmem>>, vector<1x16x128xf32>
      %12 = vector.shape_cast %11 : vector<1x16x128xf32> to vector<16x128xf32>
      %c0_14 = arith.constant 0 : index
      %c0_15 = arith.constant 0 : index
      %13 = vector.load %arg4[%c0_14, %c0_15] : memref<128x128xf32, #tpu.memory_space<vmem>>, vector<128x128xf32>
      %cst_16 = arith.constant dense<0.000000e+00> : vector<16x128xf32>
      %14 = tpu.matmul %12, %13, %cst_16 {dimension_numbers = #tpu.dot_dimension_numbers<[1], [0], [0], [1], [0, 0, 1, 1], [], []>} : vector<16x128xf32>, vector<128x128xf32>, vector<16x128xf32> -> vector<16x128xf32>
      %15 = vector.shape_cast %14 : vector<16x128xf32> to vector<1x16x128xf32>
      %c0_17 = arith.constant 0 : index
      %c0_18 = arith.constant 0 : index
      %c0_19 = arith.constant 0 : index
      %16 = vector.load %arg7[%c0_17, %c0_18, %c0_19] : memref<1x16x128xf32, #tpu.memory_space<vmem>>, vector<1x16x128xf32>
      tpu.vector_store %arg7[%c0_17, %c0_18, %c0_19], %15 {strides = array<i32>} : memref<1x16x128xf32, #tpu.memory_space<vmem>>, vector<1x16x128xf32>,
    } else {
    }
    %c0 = arith.constant 0 : index
    %c0_1 = arith.constant 0 : index
    %c0_2 = arith.constant 0 : index
    %3 = vector.load %arg3[%c0, %c0_1, %c0_2] : memref<1x16x16xf32, #tpu.memory_space<vmem>>, vector<1x16x16xf32>
    %c0_3 = arith.constant 0 : index
    %c0_4 = arith.constant 0 : index
    %c0_5 = arith.constant 0 : index
    %4 = vector.load %arg7[%c0_3, %c0_4, %c0_5] : memref<1x16x128xf32, #tpu.memory_space<vmem>>, vector<1x16x128xf32>
    "tpu.trace_start"() <{level = 10 : i32, message = "brm,bmo->bro"}> : () -> ()
    %cst = arith.constant dense<0.000000e+00> : vector<1x16x128xf32>
    %5 = tpu.matmul %3, %4, %cst {dimension_numbers = #tpu.dot_dimension_numbers<[2], [1], [1], [2], [0, 0, 0, 1, 1, 2], [0], [0]>} : vector<1x16x16xf32>, vector<1x16x128xf32>, vector<1x16x128xf32> -> vector<1x16x128xf32>
    "tpu.trace_stop"() : () -> ()
    %c0_6 = arith.constant 0 : index
    %c0_7 = arith.constant 0 : index
    %6 = vector.load %arg5[%c0_6, %c0_7] : memref<1x128xf32, #tpu.memory_space<vmem>>, vector<1x128xf32>
    %7 = vector.shape_cast %6 : vector<1x128xf32> to vector<1x1x128xf32>
    %8 = vector.broadcast %7 : vector<1x1x128xf32> to vector<1x16x128xf32>
    %9 = arith.addf %5, %8 : vector<1x16x128xf32>
    %c0_8 = arith.constant 0 : index
    %c0_9 = arith.constant 0 : index
    %c0_10 = arith.constant 0 : index
    %10 = vector.load %arg6[%c0_8, %c0_9, %c0_10] : memref<1x16x128xf32, #tpu.memory_space<vmem>>, vector<1x16x128xf32>
    tpu.vector_store %arg6[%c0_8, %c0_9, %c0_10], %9 {strides = array<i32>} : memref<1x16x128xf32, #tpu.memory_space<vmem>>, vector<1x16x128xf32>,
    return
  }
  func.func @transform_0(%arg0: i32, %arg1: i32) -> (i32, i32, i32) {
    %c0_i32 = arith.constant 0 : i32
    %c0_i32_0 = arith.constant 0 : i32
    %c0_i32_1 = arith.constant 0 : i32
    return %arg0, %c0_i32, %c0_i32_0 : i32, i32, i32
  }
  func.func @transform_1(%arg0: i32, %arg1: i32) -> (i32, i32, i32) {
    %c0_i32 = arith.constant 0 : i32
    %c0_i32_0 = arith.constant 0 : i32
    return %arg0, %arg1, %c0_i32 : i32, i32, i32
  }
  func.func @transform_2(%arg0: i32, %arg1: i32) -> (i32, i32) {
    %c0_i32 = arith.constant 0 : i32
    %c0_i32_0 = arith.constant 0 : i32
    %c0_i32_1 = arith.constant 0 : i32
    return %c0_i32, %c0_i32_0 : i32, i32
  }
  func.func @transform_3(%arg0: i32, %arg1: i32) -> (i32, i32) {
    %c0_i32 = arith.constant 0 : i32
    %c0_i32_0 = arith.constant 0 : i32
    %c0_i32_1 = arith.constant 0 : i32
    return %c0_i32, %c0_i32_0 : i32, i32
  }
  func.func @transform_4(%arg0: i32, %arg1: i32) -> (i32, i32, i32) {
    %c0_i32 = arith.constant 0 : i32
    %c0_i32_0 = arith.constant 0 : i32
    return %arg0, %arg1, %c0_i32 : i32, i32, i32
  }
}

</mosaic_0001>

<llo_original>
// kernel: tpu_custom_call.1
$region0: #{tpu_custom_call.1}
  #allocation0 [shape = 'u32[]', space=smem, size = 0x4, offset = 0x4, fixed_abs, tag = 'smem constant byte address 0x4 - core index']
  #allocation1 [shape = 'u32[144,128]{1,0:T(1,128)}', space=vmem, size = 0x12000, scoped, tag = 'internal scratch']
  #allocation2 [shape = 'f32[1,16,128]{2,1,0:T(8,128)}', space=vmem, size = 0x2000, scoped, tag = 'scratch operand']
  %s0 = inlined_call_operand.hbm [shape: f32[2,16,128], index: 0, kind: input, shape index: {}]
  %s1 = inlined_call_operand.hbm [shape: f32[2,16,16], index: 1, kind: input, shape index: {}]
  %s2 = inlined_call_operand.hbm [shape: f32[128,128], index: 2, kind: input, shape index: {}]
  %s3 = inlined_call_operand.vmem [shape: f32[1,128], index: 3, kind: input, shape index: {}]
  %s4 = inlined_call_operand.hbm [shape: f32[2,16,128], index: 4, kind: output, shape index: {}]
  %s5 = sld [smem:[#allocation0]]
  $region65: #{tpu_custom_call.1} parent=0
    _
  %s7 = ssub.s32 1, %s5
  %s8 = scalar_select 0, %s7, %s5
  $region1: #{tpu_custom_call.1} parent=0
    #allocation3 [shape = 'u8[16384]{0}', space=vmem, size = 0x4000, scoped, tag = 'input window, operand 0']
    #allocation4 [shape = 's32[2]{0}', space=sflag, size = 0x8, scoped, tag = 'scoped memory for tpu_custom_call.1']
    #allocation5 [shape = 's32[2]{0}', space=sflag, size = 0x8, scoped, tag = 'scoped memory for tpu_custom_call.1']
    #allocation6 [shape = 'u8[16384]{0}', space=vmem, size = 0x4000, scoped, tag = 'input window, operand 1']
    #allocation7 [shape = 's32[2]{0}', space=sflag, size = 0x8, scoped, tag = 'scoped memory for tpu_custom_call.1']
    #allocation8 [shape = 'u8[65536]{0}', space=vmem, size = 0x10000, scoped, tag = 'input window, operand 2, single buffered']
    #allocation9 [shape = 'u8[16384]{0}', space=vmem, size = 0x4000, scoped, tag = 'output window, operand 0']
    %9 = vsyncpa [#allocation4], 0
    %s10 = scalar_lea.sflag [#allocation4], 1
    %11 = vsyncpa %s10, 0
    %12 = vsyncpa [#allocation7], 0
    %s13 = scalar_lea.sflag [#allocation7], 1
    %14 = vsyncpa %s13, 0
    %15 = vsyncpa [#allocation5], 0
    %s16 = scalar_lea.sflag [#allocation5], 1
    %17 = vsyncpa %s16, 0
    loop: start=0, step=1, limit=4
    $region2: #{tpu_custom_call.1} parent=1 // loop_pre_header
      _
    $region3: #{tpu_custom_call.1} parent=1 // loop_header
      %s19 = sphi 0, %s23
      %p20 = scmp.ge.s32.totalorder %s19, 4
      %s26 = sphi 0, %s38
      %s27 = sphi 0, %s34
      %s28 = sphi 0, %s26
      %s29 = sphi 0, %s27
      %s30 = sphi 0, %s28
      %s31 = sphi 0, %s29
      %s41 = sphi 0, %s43
      %s44 = sphi 0, %s41
      %s45 = sphi 0, %s44
      %s61 = sphi 0, %s45
      %s69 = sphi 0, %s71
      %s72 = sphi 0, %s69
      %s73 = sphi 0, %s72
      %s89 = sphi 0, %s73
      %s93 = sphi 0, %s93
      %s95 = sphi 0, %s93
      %s96 = sphi 0, %s95
      %s110 = sphi 0, %s96
      %s114 = sphi 0, %s114
      %s116 = sphi 0, %s114
      %s117 = sphi 0, %s116
      %s131 = sphi 0, %s117
      %s139 = sphi 0, %s141
      %s142 = sphi 0, %s139
      %s143 = sphi 0, %s142
      %s159 = sphi 0, %s143
    $region4: #{tpu_custom_call.1} parent=1 // loop_header_branch
      %22 = sbr.rel (%p20) target = $region8
    $region5: #{tpu_custom_call.1} parent=1 // loop_body
      %s24 = ssub.s32 %s19, 1
      %s25 = ssub.s32 %s19, 2
      %s32 = sadd.s32 1, %s27
      %p33 = scmp.ge.s32.totalorder %s32, 1
      %s34 = scalar_select %p33, 0, %s32
      %s35 = sadd.s32 1, %s26
      %s36 = scalar_select %p33, %s35, %s26
      %p37 = scmp.ge.s32.totalorder %s36, 2
      %s38 = scalar_select %p37, 0, %s36
      %s39 = ssub.s32 %s26, %s38
      %p40 = scmp.eq.s32.totalorder %s39, 0
      %s42 = sadd.s32 %s41, 1
      %s43 = scalar_select %p40, %s41, %s42
      %p46 = pneg %p40
      %p47 = scmp.eq.s32.totalorder %s19, 1
      %p48 = por %p46, %p47
      %p49 = scmp.ne.s32.totalorder %s41, %s44
      %p50 = scmp.eq.s32.totalorder %s19, 0
      %p51 = por %p49, %p50
      %p52 = scmp.ne.s32.totalorder %s41, %s44
      %p53 = scmp.eq.s32.totalorder %s24, 1
      %p54 = por %p52, %p53
      %p55 = scmp.ne.s32.totalorder %s44, %s45
      %p56 = scmp.eq.s32.totalorder %s24, 0
      %p57 = por %p55, %p56
      %p58 = scmp.ne.s32.totalorder %s44, %s45
      %p59 = scmp.eq.s32.totalorder %s25, 1
      %p60 = por %p58, %p59
      %p62 = scmp.ne.s32.totalorder %s45, %s61
      %p63 = scmp.eq.s32.totalorder %s25, 0
      %p64 = por %p62, %p63
      %s65 = ssub.s32 %s26, %s38
      %s66 = ssub.s32 %s27, %s34
      %s67 = sor.u32 %s65, %s66
      %p68 = scmp.eq.s32.totalorder %s67, 0
      %s70 = sadd.s32 %s69, 1
      %s71 = scalar_select %p68, %s69, %s70
      %p74 = pneg %p68
      %p75 = scmp.eq.s32.totalorder %s19, 1
      %p76 = por %p74, %p75
      %p77 = scmp.ne.s32.totalorder %s69, %s72
      %p78 = scmp.eq.s32.totalorder %s19, 0
      %p79 = por %p77, %p78
      %p80 = scmp.ne.s32.totalorder %s69, %s72
      %p81 = scmp.eq.s32.totalorder %s24, 1
      %p82 = por %p80, %p81
      %p83 = scmp.ne.s32.totalorder %s72, %s73
      %p84 = scmp.eq.s32.totalorder %s24, 0
      %p85 = por %p83, %p84
      %p86 = scmp.ne.s32.totalorder %s72, %s73
      %p87 = scmp.eq.s32.totalorder %s25, 1
      %p88 = por %p86, %p87
      %p90 = scmp.ne.s32.totalorder %s73, %s89
      %p91 = scmp.eq.s32.totalorder %s25, 0
      %p92 = por %p90, %p91
      %s94 = sadd.s32 %s93, 1
      %p97 = scmp.eq.s32.totalorder %s19, 1
      %p98 = scmp.ne.s32.totalorder %s93, %s95
      %p99 = scmp.eq.s32.totalorder %s19, 0
      %p100 = por %p98, %p99
      %p101 = scmp.ne.s32.totalorder %s93, %s95
      %p102 = scmp.eq.s32.totalorder %s24, 1
      %p103 = por %p101, %p102
      %p104 = scmp.ne.s32.totalorder %s95, %s96
      %p105 = scmp.eq.s32.totalorder %s24, 0
      %p106 = por %p104, %p105
      %p107 = scmp.ne.s32.totalorder %s95, %s96
      %p108 = scmp.eq.s32.totalorder %s25, 1
      %p109 = por %p107, %p108
      %p111 = scmp.ne.s32.totalorder %s96, %s110
      %p112 = scmp.eq.s32.totalorder %s25, 0
      %p113 = por %p111, %p112
      %s115 = sadd.s32 %s114, 1
      %p118 = scmp.eq.s32.totalorder %s19, 1
      %p119 = scmp.ne.s32.totalorder %s114, %s116
      %p120 = scmp.eq.s32.totalorder %s19, 0
      %p121 = por %p119, %p120
      %p122 = scmp.ne.s32.totalorder %s114, %s116
      %p123 = scmp.eq.s32.totalorder %s24, 1
      %p124 = por %p122, %p123
      %p125 = scmp.ne.s32.totalorder %s116, %s117
      %p126 = scmp.eq.s32.totalorder %s24, 0
      %p127 = por %p125, %p126
      %p128 = scmp.ne.s32.totalorder %s116, %s117
      %p129 = scmp.eq.s32.totalorder %s25, 1
      %p130 = por %p128, %p129
      %p132 = scmp.ne.s32.totalorder %s117, %s131
      %p133 = scmp.eq.s32.totalorder %s25, 0
      %p134 = por %p132, %p133
      %s135 = ssub.s32 %s26, %s38
      %s136 = ssub.s32 %s27, %s34
      %s137 = sor.u32 %s135, %s136
      %p138 = scmp.eq.s32.totalorder %s137, 0
      %s140 = sadd.s32 %s139, 1
      %s141 = scalar_select %p138, %s139, %s140
      %p144 = pneg %p138
      %p145 = scmp.eq.s32.totalorder %s19, 1
      %p146 = por %p144, %p145
      %p147 = scmp.ne.s32.totalorder %s139, %s142
      %p148 = scmp.eq.s32.totalorder %s19, 0
      %p149 = por %p147, %p148
      %p150 = scmp.ne.s32.totalorder %s139, %s142
      %p151 = scmp.eq.s32.totalorder %s24, 1
      %p152 = por %p150, %p151
      %p153 = scmp.ne.s32.totalorder %s142, %s143
      %p154 = scmp.eq.s32.totalorder %s24, 0
      %p155 = por %p153, %p154
      %p156 = scmp.ne.s32.totalorder %s142, %s143
      %p157 = scmp.eq.s32.totalorder %s25, 1
      %p158 = por %p156, %p157
      %p160 = scmp.ne.s32.totalorder %s143, %s159
      %p161 = scmp.eq.s32.totalorder %s25, 0
      %p162 = por %p160, %p161
      %p163 = scmp.le.s32.totalorder 1, %s19
      %p164 = scmp.lt.s32.totalorder %s19, 3
      %p165 = pnand %p163, %p164
      %p166 = pneg %p165
      // Predicated region
      $region9: #{tpu_custom_call.1} parent=5 // pred_check
        _
      $region10: #{tpu_custom_call.1} parent=5 // pred_check_branch
        %168 = sbr.rel (%p165) target = $region12
      $region11: #{tpu_custom_call.1} parent=5 // pred_region
        %s169 = ssub.s32 %s19, 1
        // Predicated region
        $region13: #{tpu_custom_call.1} parent=11 // pred_check
          %p170 = pneg %p106
        $region14: #{tpu_custom_call.1} parent=11 // pred_check_branch
          %172 = sbr.rel (%p170) target = $region16
        $region15: #{tpu_custom_call.1} parent=11 // pred_region
          %s174 = ssub.s32 2048, 2048
          %175 = vsyncadd [#allocation7], %s174
          %s176 = sshll.u32 [#allocation8], 4
          %s177 = int_to_ptr.vmem [resolvable:$true] %s176
          %182 = dma.hbm_to_vmem [thread:$0]  %s2, 2048, %s177, [#allocation7], 128, 128, 8
        $region16: #{tpu_custom_call.1} parent=11 // pred_fallthru
          _
        // Predicated region
        $region17: #{tpu_custom_call.1} parent=11 // pred_check
          %p183 = pneg %p127
        $region18: #{tpu_custom_call.1} parent=11 // pred_check_branch
          %185 = sbr.rel (%p183) target = $region20
        $region19: #{tpu_custom_call.1} parent=11 // pred_region
          _
        $region20: #{tpu_custom_call.1} parent=11 // pred_fallthru
          _
      $region12: #{tpu_custom_call.1} parent=5 // pred_fallthru
        _
      %p186 = scmp.lt.s32.totalorder %s19, 2
      // Predicated region
      $region21: #{tpu_custom_call.1} parent=5 // pred_check
        %p187 = pneg %p186
      $region22: #{tpu_custom_call.1} parent=5 // pred_check_branch
        %189 = sbr.rel (%p187) target = $region24
      $region23: #{tpu_custom_call.1} parent=5 // pred_region
        // Predicated region
        $region25: #{tpu_custom_call.1} parent=23 // pred_check
          %p190 = pneg %p51
        $region26: #{tpu_custom_call.1} parent=23 // pred_check_branch
          %192 = sbr.rel (%p190) target = $region28
        $region27: #{tpu_custom_call.1} parent=23 // pred_region
          %s193 = sand.u32 %s41, 1
          %s194 = scalar_lea.sflag [#allocation4], %s193
          %s195 = sand.u32 %s41, 1
          %s196 = smul.addr %s195, 16
          %s197 = scalar_lea.vmem [#allocation3], %s196
          %s199 = ssub.s32 256, 256
          %200 = vsyncadd %s194, %s199
          %s201 = smul.addr %s26, 2
          %s202 = smul.addr %s201, 128
          %s203 = scalar_lea.hbm %s0, %s202
          %s204 = sshll.u32 %s197, 4
          %s205 = int_to_ptr.vmem [resolvable:$true] %s204
          %210 = dma.hbm_to_vmem [thread:$0]  %s203, 256, %s205, %s194, 128, 128, 8
        $region28: #{tpu_custom_call.1} parent=23 // pred_fallthru
          _
        // Predicated region
        $region29: #{tpu_custom_call.1} parent=23 // pred_check
          %p211 = pneg %p79
        $region30: #{tpu_custom_call.1} parent=23 // pred_check_branch
          %213 = sbr.rel (%p211) target = $region32
        $region31: #{tpu_custom_call.1} parent=23 // pred_region
          %s214 = sand.u32 %s19, 1
          %s215 = scalar_lea.sflag [#allocation7], %s214
          %s216 = sand.u32 %s69, 1
          %s217 = smul.addr %s216, 16
          %s218 = scalar_lea.vmem [#allocation6], %s217
          %s219 = smul.u32 2, %s27
          %s221 = ssub.s32 256, 256
          %222 = vsyncadd %s215, %s221
          %s223 = smul.addr %s26, 2
          %s224 = sadd.s32 %s219, %s223
          %s225 = smul.addr %s224, 128
          %s226 = scalar_lea.hbm %s1, %s225
          %s227 = sshll.u32 %s218, 4
          %s228 = int_to_ptr.vmem [resolvable:$true] %s227
          %233 = dma.hbm_to_vmem [thread:$0]  %s226, 256, %s228, %s215, 128, 128, 8
        $region32: #{tpu_custom_call.1} parent=23 // pred_fallthru
          _
      $region24: #{tpu_custom_call.1} parent=5 // pred_fallthru
        _
      %p234 = scmp.le.s32.totalorder 1, %s19
      %p235 = scmp.lt.s32.totalorder %s19, 3
      %p236 = pnand %p234, %p235
      %p237 = pneg %p236
      // Predicated region
      $region33: #{tpu_custom_call.1} parent=5 // pred_check
        _
      $region34: #{tpu_custom_call.1} parent=5 // pred_check_branch
        %239 = sbr.rel (%p236) target = $region36
      $region35: #{tpu_custom_call.1} parent=5 // pred_region
        %s240 = ssub.s32 %s19, 1
        %s241 = sand.u32 %s44, 1
        %s242 = scalar_lea.sflag [#allocation4], %s241
        %s243 = sand.u32 %s44, 1
        %s244 = smul.addr %s243, 16
        %s245 = scalar_lea.vmem [#allocation3], %s244
        // Predicated region
        $region37: #{tpu_custom_call.1} parent=35 // pred_check
          %p246 = pneg %p57
        $region38: #{tpu_custom_call.1} parent=35 // pred_check_branch
          %248 = sbr.rel (%p246) target = $region40
        $region39: #{tpu_custom_call.1} parent=35 // pred_region
          %249 = dma.done %s242, 256
        $region40: #{tpu_custom_call.1} parent=35 // pred_fallthru
          _
        %s250 = sand.u32 %s24, 1
        %s251 = scalar_lea.sflag [#allocation7], %s250
        %s252 = sand.u32 %s72, 1
        %s253 = smul.addr %s252, 16
        %s254 = scalar_lea.vmem [#allocation6], %s253
        // Predicated region
        $region41: #{tpu_custom_call.1} parent=35 // pred_check
          %p255 = pneg %p85
        $region42: #{tpu_custom_call.1} parent=35 // pred_check_branch
          %257 = sbr.rel (%p255) target = $region44
        $region43: #{tpu_custom_call.1} parent=35 // pred_region
          %258 = dma.done %s251, 256
        $region44: #{tpu_custom_call.1} parent=35 // pred_fallthru
          _
        // Predicated region
        $region45: #{tpu_custom_call.1} parent=35 // pred_check
          %p259 = pneg %p106
        $region46: #{tpu_custom_call.1} parent=35 // pred_check_branch
          %261 = sbr.rel (%p259) target = $region48
        $region47: #{tpu_custom_call.1} parent=35 // pred_region
          %262 = dma.done [#allocation7], 2048
        $region48: #{tpu_custom_call.1} parent=35 // pred_fallthru
          _
        %s263 = sand.u32 %s44, 1
        %s264 = scalar_lea.sflag [#allocation4], %s263
        %s265 = sand.u32 %s44, 1
        %s266 = smul.addr %s265, 16
        %s267 = scalar_lea.vmem [#allocation3], %s266
        %p268 = pneg %p57
        %p269 = pneg %p54
        %s270 = sand.u32 %s24, 1
        %s271 = scalar_lea.sflag [#allocation7], %s270
        %s272 = sand.u32 %s72, 1
        %s273 = smul.addr %s272, 16
        %s274 = scalar_lea.vmem [#allocation6], %s273
        %p275 = pneg %p85
        %p276 = pneg %p82
        %p277 = pneg %p106
        %p278 = pneg %p103
        %p279 = pneg %p127
        %p280 = pneg %p124
        %p281 = pneg %p155
        %p282 = pneg %p152
        %s283 = sand.u32 %s142, 1
        %s284 = scalar_lea.sflag [#allocation5], %s283
        %s285 = sand.u32 %s142, 1
        %s286 = smul.addr %s285, 16
        %s287 = scalar_lea.vmem [#allocation9], %s286
        %s288 = smul.u32 2, %s29
        %s289 = smul.u32 2, %s29
        %p290 = scmp.eq.s32.totalorder %s29, 0
        // Predicated region
        $region49: #{tpu_custom_call.1} parent=35 // pred_check
          %p291 = pneg %p290
        $region50: #{tpu_custom_call.1} parent=35 // pred_check_branch
          %293 = sbr.rel (%p291) target = $region52
        $region51: #{tpu_custom_call.1} parent=35 // pred_region
          %v294 = vld [vmem:[%s245] sm:$0xff]
          %v295 = vld [vmem:[%s245 + $0x8] sm:$0xff]
          %v296 = vld [vmem:[#allocation8] sm:$0xff]
          %v297 = vld [vmem:[#allocation8 + $0x8] sm:$0xff]
          %v298 = vld [vmem:[#allocation8 + $0x10] sm:$0xff]
          %v299 = vld [vmem:[#allocation8 + $0x18] sm:$0xff]
          %v300 = vld [vmem:[#allocation8 + $0x20] sm:$0xff]
          %v301 = vld [vmem:[#allocation8 + $0x28] sm:$0xff]
          %v302 = vld [vmem:[#allocation8 + $0x30] sm:$0xff]
          %v303 = vld [vmem:[#allocation8 + $0x38] sm:$0xff]
          %v304 = vld [vmem:[#allocation8 + $0x40] sm:$0xff]
          %v305 = vld [vmem:[#allocation8 + $0x48] sm:$0xff]
          %v306 = vld [vmem:[#allocation8 + $0x50] sm:$0xff]
          %v307 = vld [vmem:[#allocation8 + $0x58] sm:$0xff]
          %v308 = vld [vmem:[#allocation8 + $0x60] sm:$0xff]
          %v309 = vld [vmem:[#allocation8 + $0x68] sm:$0xff]
          %v310 = vld [vmem:[#allocation8 + $0x70] sm:$0xff]
          %v311 = vld [vmem:[#allocation8 + $0x78] sm:$0xff]
          %312 = vmatprep.subr.mxu0 0.0
          %313 = vmatpush1.msra.mxu0 %v311
          %314 = vmatprep.subr.mxu0 0.0
          %315 = vmatpush1.msra.mxu0 %v310
          %316 = vmatprep.subr.mxu0 0.0
          %317 = vmatpush1.msra.mxu0 %v309
          %318 = vmatprep.subr.mxu0 0.0
          %319 = vmatpush1.msra.mxu0 %v308
          %320 = vmatprep.subr.mxu0 0.0
          %321 = vmatpush1.msra.mxu0 %v307
          %322 = vmatprep.subr.mxu0 0.0
          %323 = vmatpush1.msra.mxu0 %v306
          %324 = vmatprep.subr.mxu0 0.0
          %325 = vmatpush1.msra.mxu0 %v305
          %326 = vmatprep.subr.mxu0 0.0
          %327 = vmatpush1.msra.mxu0 %v304
          %328 = vmatprep.subr.mxu0 0.0
          %329 = vmatpush1.msra.mxu0 %v303
          %330 = vmatprep.subr.mxu0 0.0
          %331 = vmatpush1.msra.mxu0 %v302
          %332 = vmatprep.subr.mxu0 0.0
          %333 = vmatpush1.msra.mxu0 %v301
          %334 = vmatprep.subr.mxu0 0.0
          %335 = vmatpush1.msra.mxu0 %v300
          %336 = vmatprep.subr.mxu0 0.0
          %337 = vmatpush1.msra.mxu0 %v299
          %338 = vmatprep.subr.mxu0 0.0
          %339 = vmatpush1.msra.mxu0 %v298
          %340 = vmatprep.subr.mxu0 0.0
          %341 = vmatpush1.msra.mxu0 %v297
          %342 = vmatprep.subr.mxu0 0.0
          %343 = vmatpush1.msra.mxu0 %v296
          %344 = vmatprep.subr.mxu0 0.0
          %345 = vmatpush2.msra.mxu0 0.0
          %346 = vmatprep.subr.mxu0 0.0
          %347 = vmatpush2.msra.mxu0 0.0
          %348 = vmatprep.subr.mxu0 0.0
          %349 = vmatpush2.msra.mxu0 0.0
          %350 = vmatprep.subr.mxu0 0.0
          %351 = vmatpush2.msra.mxu0 0.0
          %352 = vmatprep.subr.mxu0 0.0
          %353 = vmatpush2.msra.mxu0 0.0
          %354 = vmatprep.subr.mxu0 0.0
          %355 = vmatpush2.msra.mxu0 0.0
          %356 = vmatprep.subr.mxu0 0.0
          %357 = vmatpush2.msra.mxu0 0.0
          %358 = vmatprep.subr.mxu0 0.0
          %359 = vmatpush2.msra.mxu0 0.0
          %360 = vmatprep.subr.mxu0 0.0
          %361 = vmatpush2.msra.mxu0 0.0
          %362 = vmatprep.subr.mxu0 0.0
          %363 = vmatpush2.msra.mxu0 0.0
          %364 = vmatprep.subr.mxu0 0.0
          %365 = vmatpush2.msra.mxu0 0.0
          %366 = vmatprep.subr.mxu0 0.0
          %367 = vmatpush2.msra.mxu0 0.0
          %368 = vmatprep.subr.mxu0 0.0
          %369 = vmatpush2.msra.mxu0 0.0
          %370 = vmatprep.subr.mxu0 0.0
          %371 = vmatpush2.msra.mxu0 0.0
          %372 = vmatprep.subr.mxu0 0.0
          %373 = vmatpush2.msra.mxu0 0.0
          %374 = vmatprep.subr.mxu0 0.0
          %375 = vmatpush2.msra.mxu0 0.0
          %376 = vmatprep.mubr.f32.mxu0 0.0
          %377 = vmatmul.mubr.f32.gmra.mxu0 %v294
          %v378 = vpop.f32.mrf.mxu0
          %v379 = vadd.f32 0.0, %v378
          %v380 = vpop.f32.mrf.mxu0
          %381 = vmatprep.mubr.f32.mxu0 0.0
          %382 = vmatmul.mubr.f32.gmra.mxu0 %v295
          %v383 = vpop.f32.mrf.mxu0
          %v384 = vadd.f32 0.0, %v383
          %v385 = vpop.f32.mrf.mxu0
          %386 = vdwg.mxu0
          %387 = vst [vmem:[#allocation2] sm:$0xff] %v379
          %388 = vst [vmem:[#allocation2 + $0x8] sm:$0xff] %v384
        $region52: #{tpu_custom_call.1} parent=35 // pred_fallthru
          _
        %v389 = vld [vmem:[%s254] sm:$0xff]
        %v390 = vld [vmem:[%s254 + $0x8] sm:$0xff]
        %v391 = vld [vmem:[#allocation2] sm:$0xff]
        %v392 = vld [vmem:[#allocation2 + $0x8] sm:$0xff]
        %v393 = vld [vmem:[%s3] sm:$0x1]
        %v395 = vlaneseq
        %v396 = vshrl.u32 %v395, 7
        %v397 = vsub.s32 0, %v396
        %v398 = vrot.slane %v393, %v397
        %vm400 = vcmask 130048
        %v402 = vsel %vm400, %v389, 0
        %v405 = vsel %vm400, %v390, 0
        %407 = vmatprep.subr.mxu0 0.0
        %408 = vmatpush1.msra.mxu0 0.0
        %409 = vmatprep.subr.mxu0 0.0
        %410 = vmatpush1.msra.mxu0 0.0
        %411 = vmatprep.subr.mxu0 0.0
        %412 = vmatpush1.msra.mxu0 0.0
        %413 = vmatprep.subr.mxu0 0.0
        %414 = vmatpush1.msra.mxu0 0.0
        %415 = vmatprep.subr.mxu0 0.0
        %416 = vmatpush1.msra.mxu0 0.0
        %417 = vmatprep.subr.mxu0 0.0
        %418 = vmatpush1.msra.mxu0 0.0
        %419 = vmatprep.subr.mxu0 0.0
        %420 = vmatpush1.msra.mxu0 0.0
        %421 = vmatprep.subr.mxu0 0.0
        %422 = vmatpush1.msra.mxu0 0.0
        %423 = vmatprep.subr.mxu0 0.0
        %424 = vmatpush1.msra.mxu0 0.0
        %425 = vmatprep.subr.mxu0 0.0
        %426 = vmatpush1.msra.mxu0 0.0
        %427 = vmatprep.subr.mxu0 0.0
        %428 = vmatpush1.msra.mxu0 0.0
        %429 = vmatprep.subr.mxu0 0.0
        %430 = vmatpush1.msra.mxu0 0.0
        %431 = vmatprep.subr.mxu0 0.0
        %432 = vmatpush1.msra.mxu0 0.0
        %433 = vmatprep.subr.mxu0 0.0
        %434 = vmatpush1.msra.mxu0 0.0
        %435 = vmatprep.subr.mxu0 0.0
        %436 = vmatpush1.msra.mxu0 %v392
        %437 = vmatprep.subr.mxu0 0.0
        %438 = vmatpush1.msra.mxu0 %v391
        %439 = vmatprep.subr.mxu0 0.0
        %440 = vmatpush2.msra.mxu0 0.0
        %441 = vmatprep.subr.mxu0 0.0
        %442 = vmatpush2.msra.mxu0 0.0
        %443 = vmatprep.subr.mxu0 0.0
        %444 = vmatpush2.msra.mxu0 0.0
        %445 = vmatprep.subr.mxu0 0.0
        %446 = vmatpush2.msra.mxu0 0.0
        %447 = vmatprep.subr.mxu0 0.0
        %448 = vmatpush2.msra.mxu0 0.0
        %449 = vmatprep.subr.mxu0 0.0
        %450 = vmatpush2.msra.mxu0 0.0
        %451 = vmatprep.subr.mxu0 0.0
        %452 = vmatpush2.msra.mxu0 0.0
        %453 = vmatprep.subr.mxu0 0.0
        %454 = vmatpush2.msra.mxu0 0.0
        %455 = vmatprep.subr.mxu0 0.0
        %456 = vmatpush2.msra.mxu0 0.0
        %457 = vmatprep.subr.mxu0 0.0
        %458 = vmatpush2.msra.mxu0 0.0
        %459 = vmatprep.subr.mxu0 0.0
        %460 = vmatpush2.msra.mxu0 0.0
        %461 = vmatprep.subr.mxu0 0.0
        %462 = vmatpush2.msra.mxu0 0.0
        %463 = vmatprep.subr.mxu0 0.0
        %464 = vmatpush2.msra.mxu0 0.0
        %465 = vmatprep.subr.mxu0 0.0
        %466 = vmatpush2.msra.mxu0 0.0
        %467 = vmatprep.subr.mxu0 0.0
        %468 = vmatpush2.msra.mxu0 0.0
        %469 = vmatprep.subr.mxu0 0.0
        %470 = vmatpush2.msra.mxu0 0.0
        %471 = vmatprep.mubr.f32.mxu0 0.0
        %472 = vmatmul.mubr.f32.gmra.mxu0 %v402
        %v473 = vpop.f32.mrf.mxu0
        %v474 = vadd.f32 %v398, %v473
        %v475 = vpop.f32.mrf.mxu0
        %476 = vmatprep.mubr.f32.mxu0 0.0
        %477 = vmatmul.mubr.f32.gmra.mxu0 %v405
        %v478 = vpop.f32.mrf.mxu0
        %v479 = vadd.f32 %v398, %v478
        %v480 = vpop.f32.mrf.mxu0
        %481 = vdwg.mxu0
        %482 = vst [vmem:[%s287] sm:$0xff] %v474
        %483 = vst [vmem:[%s287 + $0x8] sm:$0xff] %v479
        %s484 = sand.u32 %s142, 1
        %s485 = scalar_lea.sflag [#allocation5], %s484
        %s486 = sand.u32 %s142, 1
        %s487 = smul.addr %s486, 16
        %s488 = scalar_lea.vmem [#allocation9], %s487
        // Predicated region
        $region53: #{tpu_custom_call.1} parent=35 // pred_check
          %p489 = pneg %p152
        $region54: #{tpu_custom_call.1} parent=35 // pred_check_branch
          %491 = sbr.rel (%p489) target = $region56
        $region55: #{tpu_custom_call.1} parent=35 // pred_region
          %s492 = smul.u32 2, %s29
          %s494 = ssub.s32 256, 256
          %495 = vsyncadd %s485, %s494
          %s496 = smul.addr %s28, 2
          %s497 = sadd.s32 %s492, %s496
          %s498 = smul.addr %s497, 128
          %s499 = scalar_lea.hbm %s4, %s498
          %s500 = sshll.u32 %s488, 4
          %s501 = int_to_ptr.vmem [resolvable:$true] %s500
          %506 = dma.vmem_to_hbm [thread:$0]  %s501, 256, %s499, %s485, 128, 128, 8
        $region56: #{tpu_custom_call.1} parent=35 // pred_fallthru
          _
      $region36: #{tpu_custom_call.1} parent=5 // pred_fallthru
        _
      %p507 = scmp.le.s32.totalorder 2, %s19
      // Predicated region
      $region57: #{tpu_custom_call.1} parent=5 // pred_check
        %p508 = pneg %p507
      $region58: #{tpu_custom_call.1} parent=5 // pred_check_branch
        %510 = sbr.rel (%p508) target = $region60
      $region59: #{tpu_custom_call.1} parent=5 // pred_region
        %s511 = ssub.s32 %s19, 2
        // Predicated region
        $region61: #{tpu_custom_call.1} parent=59 // pred_check
          %p512 = pneg %p158
        $region62: #{tpu_custom_call.1} parent=59 // pred_check_branch
          %514 = sbr.rel (%p512) target = $region64
        $region63: #{tpu_custom_call.1} parent=59 // pred_region
          %s515 = sand.u32 %s143, 1
          %s516 = scalar_lea.sflag [#allocation5], %s515
          %s517 = sand.u32 %s143, 1
          %s518 = smul.addr %s517, 16
          %s519 = scalar_lea.vmem [#allocation9], %s518
          %520 = dma.done %s516, 256
        $region64: #{tpu_custom_call.1} parent=59 // pred_fallthru
          _
      $region60: #{tpu_custom_call.1} parent=5 // pred_fallthru
        _
    $region6: #{tpu_custom_call.1} parent=1 // loop_footer
      %s23 = sadd.s32 1, %s19
    $region7: #{tpu_custom_call.1} parent=1 // loop_footer_branch
      %18 = sbr.rel target = $region3
    $region8: #{tpu_custom_call.1} parent=1 // loop_exit
      _
    %521 = vsyncpa [#allocation4], 1
    %s522 = scalar_lea.sflag [#allocation4], 1
    %523 = vsyncpa %s522, 1
    %524 = vsyncpa [#allocation7], 1
    %s525 = scalar_lea.sflag [#allocation7], 1
    %526 = vsyncpa %s525, 1
    %527 = vsyncpa [#allocation5], 1
    %s528 = scalar_lea.sflag [#allocation5], 1
    %529 = vsyncpa %s528, 1

</llo_original>
